<compile_context>
chip_gen: v6e
topology: v6e:2x2x1
jax: 0.10.0
libtpu: 0.0.40
codegen_flags: <defaults>
</compile_context>

<pallas_src>
import functools

import jax
import jax.numpy as jnp
import numpy as np
from jax import lax
from jax.experimental import pallas as pl
from jax.experimental.pallas import tpu as pltpu


def _csam_kernel(w_ref, bg_ref, smask_ref, cmask_ref, x_ref, o_ref, *, width):
    # w_ref:     (27,)    f32 SMEM — flattened Conv3d(1,1,3,3,3) weight
    # bg_ref:    (2,)     f32 SMEM — [conv bias, gamma]
    # smask_ref: (9, HW)  f32 VMEM — combined (dh, dw) validity masks per spatial tap
    # cmask_ref: (R, 2)   f32 VMEM — col 0: c-1 valid, col 1: c+1 valid (per row)
    # x_ref:     (R, HW)  VMEM — current block of (batch*channel, H*W)
    # o_ref:     (R, HW)  VMEM — output block
    R, HW = o_ref.shape
    W = width

    xf = x_ref[...].astype(jnp.float32)                       # (R, HW)

    # +/-1 conv-depth (channel) neighbours: sublane rolls (XLU) + per-row seam
    # masks.  Wrap-around at block edges / batch seams is zeroed by cmask.
    m_lo = cmask_ref[:, 0:1]                                   # (R, 1)
    m_hi = cmask_ref[:, 1:2]                                   # (R, 1)
    x_lo = pltpu.roll(xf, 1, 0) * m_lo                         # x[c-1]
    x_hi = pltpu.roll(xf, (-1) % R, 0) * m_hi                  # x[c+1]
    xc = (x_lo, xf, x_hi)

    acc = None
    for k in range(9):                                         # k = dh*3 + dw
        oh = k // 3 - 1
        ow = k % 3 - 1
        # Weight the channel-shifted copies first (cheap VPU FMAs)...
        z = (w_ref[0 * 9 + k] * xc[0]
             + w_ref[1 * 9 + k] * xc[1]
             + w_ref[2 * 9 + k] * xc[2])
        # ... then one lane roll per (dh, dw) pair: out[p] takes z[p + s].
        s = oh * W + ow
        if s != 0:
            z = pltpu.roll(z, (-s) % HW, 1)
        if k != 4:                                             # centre tap: no mask
            z = z * smask_ref[k:k + 1, :]
        acc = z if acc is None else acc + z

    bias = bg_ref[0]
    gamma = bg_ref[1]
    # sigmoid(u) = 0.5 * (tanh(0.5*u) + 1): transcendental on the EUP, no divide.
    t = jnp.tanh(0.5 * (acc + bias))
    att = (0.5 * gamma) * t + (0.5 * gamma)                    # gamma * sigmoid(conv)
    o_ref[...] = (xf * (1.0 + att)).astype(o_ref.dtype)        # x * att + x


def _vmem_capacity_bytes():
    try:
        info = pltpu.get_tpu_info()
        cap = getattr(info, "vmem_capacity_bytes", 0)
        if cap:
            return int(cap)
    except Exception:
        pass
    return 64 * 2**20          # conservative default: v7x per-core VMEM


def _batches_per_block(B, C, HW):
    """Whole batches per grid step: ~2 MiB f32 slab, divisor of B, 8-row aligned."""
    per_batch = C * HW * 4
    bt = int(max(1, min(B, (2 * 2**20) // max(per_batch, 1))))
    while B % bt != 0:
        bt -= 1
    # (8, 128) block rule: second-to-last block dim must be a multiple of 8
    # unless it spans the full array (last dim HW always spans the full array).
    if bt < B and (bt * C) % 8 != 0:
        cands = [d for d in range(bt, 0, -1) if B % d == 0 and (d * C) % 8 == 0]
        bt = cands[0] if cands else B
    return bt


def csam_forward(x, conv_w, conv_b, gamma):
    """x: (B, C, H, W); conv_w: (1,1,3,3,3); conv_b: (1,); gamma: (1,)."""
    B, C, H, W = x.shape
    HW = H * W
    Rt = B * C

    xf = x.reshape(Rt, HW)                                    # free relabel in HBM
    w_flat = conv_w.reshape(-1).astype(jnp.float32)           # (27,)
    bg = jnp.concatenate([conv_b.reshape(1), gamma.reshape(1)]).astype(jnp.float32)

    # Combined (dh, dw) validity masks, one lane-dense row per spatial tap.
    hh = jnp.arange(HW, dtype=jnp.int32) // W
    ww = jnp.arange(HW, dtype=jnp.int32) % W
    rows = []
    for oh in (-1, 0, 1):
        for ow in (-1, 0, 1):
            valid = ((hh + oh >= 0) & (hh + oh < H) &
                     (ww + ow >= 0) & (ww + ow < W))
            rows.append(valid.astype(jnp.float32))
    smask = jnp.stack(rows, axis=0)                           # (9, HW)

    bt = _batches_per_block(B, C, HW)
    Rb = bt * C
    grid = (Rt // Rb,)

    # Per-row channel/batch-seam masks (identical for every block: whole batches).
    cpos = jnp.arange(Rb, dtype=jnp.int32) % C
    cmask = jnp.stack([(cpos != 0).astype(jnp.float32),
                       (cpos != C - 1).astype(jnp.float32)], axis=1)   # (Rb, 2)

    itemsize = int(jnp.dtype(x.dtype).itemsize)
    blk_bytes = Rb * HW * itemsize
    slab_f32 = Rb * HW * 4
    # Double-buffered in/out blocks + ~8 live f32 temporaries + masks + headroom,
    # capped well below physical VMEM of the current generation.
    need = 4 * blk_bytes + 8 * slab_f32 + int(smask.size) * 4 + (2 << 20)
    vmem_limit = int(max(16 << 20, min(need, int(0.6 * _vmem_capacity_bytes()))))

    kernel = functools.partial(_csam_kernel, width=W)
    out_flat = pl.pallas_call(
        kernel,
        out_shape=jax.ShapeDtypeStruct((Rt, HW), x.dtype),
        grid=grid,
        in_specs=[
            pl.BlockSpec(memory_space=pltpu.MemorySpace.SMEM),   # conv weight (27,)
            pl.BlockSpec(memory_space=pltpu.MemorySpace.SMEM),   # [bias, gamma]
            pl.BlockSpec((9, HW), lambda r: (0, 0)),             # spatial tap masks
            pl.BlockSpec((Rb, 2), lambda r: (0, 0)),             # channel seam masks
            pl.BlockSpec((Rb, HW), lambda r: (r, 0)),            # x block (flat)
        ],
        out_specs=pl.BlockSpec((Rb, HW), lambda r: (r, 0)),
        compiler_params=pltpu.CompilerParams(
            dimension_semantics=("parallel",),
            vmem_limit_bytes=vmem_limit),
        cost_estimate=pl.CostEstimate(
            flops=2 * 27 * Rt * HW,
            transcendentals=Rt * HW,
            bytes_accessed=2 * Rt * HW * itemsize),
    )(w_flat, bg, smask, cmask, xf)
    return out_flat.reshape(B, C, H, W)


def csam_ref(x, conv_w, conv_b, gamma):
    """Pure-JAX reference mirroring the PyTorch forward."""
    B, C, H, W = x.shape
    out = x[:, None].astype(jnp.float32)  # (B, 1, C, H, W)
    out = lax.conv_general_dilated(
        out, conv_w.astype(jnp.float32),
        window_strides=(1, 1, 1), padding=[(1, 1)] * 3,
        dimension_numbers=("NCDHW", "OIDHW", "NCDHW"))
    out = jax.nn.sigmoid(out + conv_b.reshape(1, 1, 1, 1, 1))
    out = gamma.reshape(()) * out
    out = out.reshape(B, C, H, W)
    return (x * out + x).astype(x.dtype)


if __name__ == "__main__":
    key = jax.random.PRNGKey(0)
    kx, kw, kb = jax.random.split(key, 3)

    B, C, H, W = 2, 4, 16, 16
    x = jax.random.normal(kx, (B, C, H, W), dtype=jnp.float32)

    # Parameter shapes from __init__: Conv3d(1,1,3,1,1) weight (1,1,3,3,3), bias (1,);
    # gamma is a (1,) parameter (zero-init would make the module a no-op), so use a
    # nonzero deterministic value to exercise the attention path.
    conv_w = 0.1 * jax.random.normal(kw, (1, 1, 3, 3, 3), dtype=jnp.float32)
    conv_b = 0.1 * jax.random.normal(kb, (1,), dtype=jnp.float32)
    gamma = jnp.array([0.5], dtype=jnp.float32)

    out = jax.block_until_ready(csam_forward(x, conv_w, conv_b, gamma))
    ref = jax.block_until_ready(csam_ref(x, conv_w, conv_b, gamma))

    assert out.shape == x.shape and out.dtype == x.dtype
    np.testing.assert_allclose(np.asarray(out), np.asarray(ref), rtol=1e-5, atol=1e-5)
    print("KERNEL_OK")
</pallas_src>

<mosaic_0001>
module attributes {stable_mosaic.version = 11 : i64} {
  func.func @_csam_kernel(%arg0: i32, %arg1: memref<27xf32, #tpu.memory_space<smem>>, %arg2: memref<2xf32, #tpu.memory_space<smem>>, %arg3: memref<9x256xf32, #tpu.memory_space<vmem>>, %arg4: memref<8x2xf32, #tpu.memory_space<vmem>>, %arg5: memref<8x256xf32, #tpu.memory_space<vmem>>, %arg6: memref<8x256xf32, #tpu.memory_space<vmem>>) attributes {dimension_semantics = [#tpu.dimension_semantics<parallel>], iteration_bounds = array<i64: 1>, scalar_prefetch = 0 : i64, scratch_operands = 0 : i64, tpu.core_type = #tpu.core_type<tc>, window_params = [{transform_indices = @transform_0, window_bounds = array<i64: 27>}, {transform_indices = @transform_1, window_bounds = array<i64: 2>}, {pipeline_mode = #tpu.pipeline_mode<synchronous>, transform_indices = @transform_2, window_bounds = array<i64: 9, 256>}, {pipeline_mode = #tpu.pipeline_mode<synchronous>, transform_indices = @transform_3, window_bounds = array<i64: 8, 2>}, {transform_indices = @transform_4, window_bounds = array<i64: 8, 256>}, {transform_indices = @transform_5, window_bounds = array<i64: 8, 256>}]} {
    %c0 = arith.constant 0 : index
    %c0_0 = arith.constant 0 : index
    %0 = vector.load %arg5[%c0, %c0_0] : memref<8x256xf32, #tpu.memory_space<vmem>>, vector<8x256xf32>
    %c0_1 = arith.constant 0 : index
    %c0_2 = arith.constant 0 : index
    %1 = vector.load %arg4[%c0_1, %c0_2] : memref<8x2xf32, #tpu.memory_space<vmem>>, vector<8x1xf32>
    %c0_3 = arith.constant 0 : index
    %c1 = arith.constant 1 : index
    %2 = vector.load %arg4[%c0_3, %c1] : memref<8x2xf32, #tpu.memory_space<vmem>>, vector<8x1xf32>
    %c1_i32 = arith.constant 1 : i32
    %3 = tpu.dynamic_rotate %0 by %c1_i32 dim 0 : vector<8x256xf32>, i32 -> vector<8x256xf32>
    %4 = vector.broadcast %1 : vector<8x1xf32> to vector<8x256xf32>
    %5 = arith.mulf %3, %4 : vector<8x256xf32>
    %c7_i32 = arith.constant 7 : i32
    %6 = tpu.dynamic_rotate %0 by %c7_i32 dim 0 : vector<8x256xf32>, i32 -> vector<8x256xf32>
    %7 = vector.broadcast %2 : vector<8x1xf32> to vector<8x256xf32>
    %8 = arith.mulf %6, %7 : vector<8x256xf32>
    %c0_4 = arith.constant 0 : index
    %9 = memref.load %arg1[%c0_4] : memref<27xf32, #tpu.memory_space<smem>>
    %10 = vector.broadcast %9 : f32 to vector<8x256xf32>
    %11 = arith.mulf %10, %5 : vector<8x256xf32>
    %c9 = arith.constant 9 : index
    %12 = memref.load %arg1[%c9] : memref<27xf32, #tpu.memory_space<smem>>
    %13 = vector.broadcast %12 : f32 to vector<8x256xf32>
    %14 = arith.mulf %13, %0 : vector<8x256xf32>
    %15 = arith.addf %11, %14 : vector<8x256xf32>
    %c18 = arith.constant 18 : index
    %16 = memref.load %arg1[%c18] : memref<27xf32, #tpu.memory_space<smem>>
    %17 = vector.broadcast %16 : f32 to vector<8x256xf32>
    %18 = arith.mulf %17, %8 : vector<8x256xf32>
    %19 = arith.addf %15, %18 : vector<8x256xf32>
    %c17_i32 = arith.constant 17 : i32
    %20 = tpu.dynamic_rotate %19 by %c17_i32 dim 1 : vector<8x256xf32>, i32 -> vector<8x256xf32>
    %c0_5 = arith.constant 0 : index
    %c0_6 = arith.constant 0 : index
    %21 = vector.load %arg3[%c0_5, %c0_6] : memref<9x256xf32, #tpu.memory_space<vmem>>, vector<1x256xf32>
    %22 = vector.broadcast %21 : vector<1x256xf32> to vector<8x256xf32>
    %23 = arith.mulf %20, %22 : vector<8x256xf32>
    %c1_7 = arith.constant 1 : index
    %24 = memref.load %arg1[%c1_7] : memref<27xf32, #tpu.memory_space<smem>>
    %25 = vector.broadcast %24 : f32 to vector<8x256xf32>
    %26 = arith.mulf %25, %5 : vector<8x256xf32>
    %c10 = arith.constant 10 : index
    %27 = memref.load %arg1[%c10] : memref<27xf32, #tpu.memory_space<smem>>
    %28 = vector.broadcast %27 : f32 to vector<8x256xf32>
    %29 = arith.mulf %28, %0 : vector<8x256xf32>
    %30 = arith.addf %26, %29 : vector<8x256xf32>
    %c19 = arith.constant 19 : index
    %31 = memref.load %arg1[%c19] : memref<27xf32, #tpu.memory_space<smem>>
    %32 = vector.broadcast %31 : f32 to vector<8x256xf32>
    %33 = arith.mulf %32, %8 : vector<8x256xf32>
    %34 = arith.addf %30, %33 : vector<8x256xf32>
    %c16_i32 = arith.constant 16 : i32
    %35 = tpu.dynamic_rotate %34 by %c16_i32 dim 1 : vector<8x256xf32>, i32 -> vector<8x256xf32>
    %c1_8 = arith.constant 1 : index
    %c0_9 = arith.constant 0 : index
    %36 = vector.load %arg3[%c1_8, %c0_9] : memref<9x256xf32, #tpu.memory_space<vmem>>, vector<1x256xf32>
    %37 = vector.broadcast %36 : vector<1x256xf32> to vector<8x256xf32>
    %38 = arith.mulf %35, %37 : vector<8x256xf32>
    %39 = arith.addf %23, %38 : vector<8x256xf32>
    %c2 = arith.constant 2 : index
    %40 = memref.load %arg1[%c2] : memref<27xf32, #tpu.memory_space<smem>>
    %41 = vector.broadcast %40 : f32 to vector<8x256xf32>
    %42 = arith.mulf %41, %5 : vector<8x256xf32>
    %c11 = arith.constant 11 : index
    %43 = memref.load %arg1[%c11] : memref<27xf32, #tpu.memory_space<smem>>
    %44 = vector.broadcast %43 : f32 to vector<8x256xf32>
    %45 = arith.mulf %44, %0 : vector<8x256xf32>
    %46 = arith.addf %42, %45 : vector<8x256xf32>
    %c20 = arith.constant 20 : index
    %47 = memref.load %arg1[%c20] : memref<27xf32, #tpu.memory_space<smem>>
    %48 = vector.broadcast %47 : f32 to vector<8x256xf32>
    %49 = arith.mulf %48, %8 : vector<8x256xf32>
    %50 = arith.addf %46, %49 : vector<8x256xf32>
    %c15_i32 = arith.constant 15 : i32
    %51 = tpu.dynamic_rotate %50 by %c15_i32 dim 1 : vector<8x256xf32>, i32 -> vector<8x256xf32>
    %c2_10 = arith.constant 2 : index
    %c0_11 = arith.constant 0 : index
    %52 = vector.load %arg3[%c2_10, %c0_11] : memref<9x256xf32, #tpu.memory_space<vmem>>, vector<1x256xf32>
    %53 = vector.broadcast %52 : vector<1x256xf32> to vector<8x256xf32>
    %54 = arith.mulf %51, %53 : vector<8x256xf32>
    %55 = arith.addf %39, %54 : vector<8x256xf32>
    %c3 = arith.constant 3 : index
    %56 = memref.load %arg1[%c3] : memref<27xf32, #tpu.memory_space<smem>>
    %57 = vector.broadcast %56 : f32 to vector<8x256xf32>
    %58 = arith.mulf %57, %5 : vector<8x256xf32>
    %c12 = arith.constant 12 : index
    %59 = memref.load %arg1[%c12] : memref<27xf32, #tpu.memory_space<smem>>
    %60 = vector.broadcast %59 : f32 to vector<8x256xf32>
    %61 = arith.mulf %60, %0 : vector<8x256xf32>
    %62 = arith.addf %58, %61 : vector<8x256xf32>
    %c21 = arith.constant 21 : index
    %63 = memref.load %arg1[%c21] : memref<27xf32, #tpu.memory_space<smem>>
    %64 = vector.broadcast %63 : f32 to vector<8x256xf32>
    %65 = arith.mulf %64, %8 : vector<8x256xf32>
    %66 = arith.addf %62, %65 : vector<8x256xf32>
    %c1_i32_12 = arith.constant 1 : i32
    %67 = tpu.dynamic_rotate %66 by %c1_i32_12 dim 1 : vector<8x256xf32>, i32 -> vector<8x256xf32>
    %c3_13 = arith.constant 3 : index
    %c0_14 = arith.constant 0 : index
    %68 = vector.load %arg3[%c3_13, %c0_14] : memref<9x256xf32, #tpu.memory_space<vmem>>, vector<1x256xf32>
    %69 = vector.broadcast %68 : vector<1x256xf32> to vector<8x256xf32>
    %70 = arith.mulf %67, %69 : vector<8x256xf32>
    %71 = arith.addf %55, %70 : vector<8x256xf32>
    %c4 = arith.constant 4 : index
    %72 = memref.load %arg1[%c4] : memref<27xf32, #tpu.memory_space<smem>>
    %73 = vector.broadcast %72 : f32 to vector<8x256xf32>
    %74 = arith.mulf %73, %5 : vector<8x256xf32>
    %c13 = arith.constant 13 : index
    %75 = memref.load %arg1[%c13] : memref<27xf32, #tpu.memory_space<smem>>
    %76 = vector.broadcast %75 : f32 to vector<8x256xf32>
    %77 = arith.mulf %76, %0 : vector<8x256xf32>
    %78 = arith.addf %74, %77 : vector<8x256xf32>
    %c22 = arith.constant 22 : index
    %79 = memref.load %arg1[%c22] : memref<27xf32, #tpu.memory_space<smem>>
    %80 = vector.broadcast %79 : f32 to vector<8x256xf32>
    %81 = arith.mulf %80, %8 : vector<8x256xf32>
    %82 = arith.addf %78, %81 : vector<8x256xf32>
    %83 = arith.addf %71, %82 : vector<8x256xf32>
    %c5 = arith.constant 5 : index
    %84 = memref.load %arg1[%c5] : memref<27xf32, #tpu.memory_space<smem>>
    %85 = vector.broadcast %84 : f32 to vector<8x256xf32>
    %86 = arith.mulf %85, %5 : vector<8x256xf32>
    %c14 = arith.constant 14 : index
    %87 = memref.load %arg1[%c14] : memref<27xf32, #tpu.memory_space<smem>>
    %88 = vector.broadcast %87 : f32 to vector<8x256xf32>
    %89 = arith.mulf %88, %0 : vector<8x256xf32>
    %90 = arith.addf %86, %89 : vector<8x256xf32>
    %c23 = arith.constant 23 : index
    %91 = memref.load %arg1[%c23] : memref<27xf32, #tpu.memory_space<smem>>
    %92 = vector.broadcast %91 : f32 to vector<8x256xf32>
    %93 = arith.mulf %92, %8 : vector<8x256xf32>
    %94 = arith.addf %90, %93 : vector<8x256xf32>
    %c255_i32 = arith.constant 255 : i32
    %95 = tpu.dynamic_rotate %94 by %c255_i32 dim 1 : vector<8x256xf32>, i32 -> vector<8x256xf32>
    %c5_15 = arith.constant 5 : index
    %c0_16 = arith.constant 0 : index
    %96 = vector.load %arg3[%c5_15, %c0_16] : memref<9x256xf32, #tpu.memory_space<vmem>>, vector<1x256xf32>
    %97 = vector.broadcast %96 : vector<1x256xf32> to vector<8x256xf32>
    %98 = arith.mulf %95, %97 : vector<8x256xf32>
    %99 = arith.addf %83, %98 : vector<8x256xf32>
    %c6 = arith.constant 6 : index
    %100 = memref.load %arg1[%c6] : memref<27xf32, #tpu.memory_space<smem>>
    %101 = vector.broadcast %100 : f32 to vector<8x256xf32>
    %102 = arith.mulf %101, %5 : vector<8x256xf32>
    %c15 = arith.constant 15 : index
    %103 = memref.load %arg1[%c15] : memref<27xf32, #tpu.memory_space<smem>>
    %104 = vector.broadcast %103 : f32 to vector<8x256xf32>
    %105 = arith.mulf %104, %0 : vector<8x256xf32>
    %106 = arith.addf %102, %105 : vector<8x256xf32>
    %c24 = arith.constant 24 : index
    %107 = memref.load %arg1[%c24] : memref<27xf32, #tpu.memory_space<smem>>
    %108 = vector.broadcast %107 : f32 to vector<8x256xf32>
    %109 = arith.mulf %108, %8 : vector<8x256xf32>
    %110 = arith.addf %106, %109 : vector<8x256xf32>
    %c241_i32 = arith.constant 241 : i32
    %111 = tpu.dynamic_rotate %110 by %c241_i32 dim 1 : vector<8x256xf32>, i32 -> vector<8x256xf32>
    %c6_17 = arith.constant 6 : index
    %c0_18 = arith.constant 0 : index
    %112 = vector.load %arg3[%c6_17, %c0_18] : memref<9x256xf32, #tpu.memory_space<vmem>>, vector<1x256xf32>
    %113 = vector.broadcast %112 : vector<1x256xf32> to vector<8x256xf32>
    %114 = arith.mulf %111, %113 : vector<8x256xf32>
    %115 = arith.addf %99, %114 : vector<8x256xf32>
    %c7 = arith.constant 7 : index
    %116 = memref.load %arg1[%c7] : memref<27xf32, #tpu.memory_space<smem>>
    %117 = vector.broadcast %116 : f32 to vector<8x256xf32>
    %118 = arith.mulf %117, %5 : vector<8x256xf32>
    %c16 = arith.constant 16 : index
    %119 = memref.load %arg1[%c16] : memref<27xf32, #tpu.memory_space<smem>>
    %120 = vector.broadcast %119 : f32 to vector<8x256xf32>
    %121 = arith.mulf %120, %0 : vector<8x256xf32>
    %122 = arith.addf %118, %121 : vector<8x256xf32>
    %c25 = arith.constant 25 : index
    %123 = memref.load %arg1[%c25] : memref<27xf32, #tpu.memory_space<smem>>
    %124 = vector.broadcast %123 : f32 to vector<8x256xf32>
    %125 = arith.mulf %124, %8 : vector<8x256xf32>
    %126 = arith.addf %122, %125 : vector<8x256xf32>
    %c240_i32 = arith.constant 240 : i32
    %127 = tpu.dynamic_rotate %126 by %c240_i32 dim 1 : vector<8x256xf32>, i32 -> vector<8x256xf32>
    %c7_19 = arith.constant 7 : index
    %c0_20 = arith.constant 0 : index
    %128 = vector.load %arg3[%c7_19, %c0_20] : memref<9x256xf32, #tpu.memory_space<vmem>>, vector<1x256xf32>
    %129 = vector.broadcast %128 : vector<1x256xf32> to vector<8x256xf32>
    %130 = arith.mulf %127, %129 : vector<8x256xf32>
    %131 = arith.addf %115, %130 : vector<8x256xf32>
    %c8 = arith.constant 8 : index
    %132 = memref.load %arg1[%c8] : memref<27xf32, #tpu.memory_space<smem>>
    %133 = vector.broadcast %132 : f32 to vector<8x256xf32>
    %134 = arith.mulf %133, %5 : vector<8x256xf32>
    %c17 = arith.constant 17 : index
    %135 = memref.load %arg1[%c17] : memref<27xf32, #tpu.memory_space<smem>>
    %136 = vector.broadcast %135 : f32 to vector<8x256xf32>
    %137 = arith.mulf %136, %0 : vector<8x256xf32>
    %138 = arith.addf %134, %137 : vector<8x256xf32>
    %c26 = arith.constant 26 : index
    %139 = memref.load %arg1[%c26] : memref<27xf32, #tpu.memory_space<smem>>
    %140 = vector.broadcast %139 : f32 to vector<8x256xf32>
    %141 = arith.mulf %140, %8 : vector<8x256xf32>
    %142 = arith.addf %138, %141 : vector<8x256xf32>
    %c239_i32 = arith.constant 239 : i32
    %143 = tpu.dynamic_rotate %142 by %c239_i32 dim 1 : vector<8x256xf32>, i32 -> vector<8x256xf32>
    %c8_21 = arith.constant 8 : index
    %c0_22 = arith.constant 0 : index
    %144 = vector.load %arg3[%c8_21, %c0_22] : memref<9x256xf32, #tpu.memory_space<vmem>>, vector<1x256xf32>
    %145 = vector.broadcast %144 : vector<1x256xf32> to vector<8x256xf32>
    %146 = arith.mulf %143, %145 : vector<8x256xf32>
    %147 = arith.addf %131, %146 : vector<8x256xf32>
    %c0_23 = arith.constant 0 : index
    %148 = memref.load %arg2[%c0_23] : memref<2xf32, #tpu.memory_space<smem>>
    %c1_24 = arith.constant 1 : index
    %149 = memref.load %arg2[%c1_24] : memref<2xf32, #tpu.memory_space<smem>>
    %150 = vector.broadcast %148 : f32 to vector<8x256xf32>
    %151 = arith.addf %147, %150 : vector<8x256xf32>
    %cst = arith.constant 5.000000e-01 : f32
    %152 = vector.broadcast %cst : f32 to vector<8x256xf32>
    %153 = arith.mulf %152, %151 : vector<8x256xf32>
    %154 = math.tanh %153 : vector<8x256xf32>
    %cst_25 = arith.constant 5.000000e-01 : f32
    %155 = arith.mulf %cst_25, %149 : f32
    %156 = vector.broadcast %155 : f32 to vector<8x256xf32>
    %157 = arith.mulf %156, %154 : vector<8x256xf32>
    %cst_26 = arith.constant 5.000000e-01 : f32
    %158 = arith.mulf %cst_26, %149 : f32
    %159 = vector.broadcast %158 : f32 to vector<8x256xf32>
    %160 = arith.addf %157, %159 : vector<8x256xf32>
    %cst_27 = arith.constant 1.000000e+00 : f32
    %161 = vector.broadcast %cst_27 : f32 to vector<8x256xf32>
    %162 = arith.addf %161, %160 : vector<8x256xf32>
    %163 = arith.mulf %0, %162 : vector<8x256xf32>
    %c0_28 = arith.constant 0 : index
    %c0_29 = arith.constant 0 : index
    %164 = vector.load %arg6[%c0_28, %c0_29] : memref<8x256xf32, #tpu.memory_space<vmem>>, vector<8x256xf32>
    tpu.vector_store %arg6[%c0_28, %c0_29], %163 {strides = array<i32>} : memref<8x256xf32, #tpu.memory_space<vmem>>, vector<8x256xf32>,
    return
  }
  func.func @transform_0(%arg0: i32) -> i32 {
    %c0_i32 = arith.constant 0 : i32
    %c0_i32_0 = arith.constant 0 : i32
    return %c0_i32 : i32
  }
  func.func @transform_1(%arg0: i32) -> i32 {
    %c0_i32 = arith.constant 0 : i32
    %c0_i32_0 = arith.constant 0 : i32
    return %c0_i32 : i32
  }
  func.func @transform_2(%arg0: i32) -> (i32, i32) {
    %c0_i32 = arith.constant 0 : i32
    %c0_i32_0 = arith.constant 0 : i32
    %c0_i32_1 = arith.constant 0 : i32
    return %c0_i32, %c0_i32_0 : i32, i32
  }
  func.func @transform_3(%arg0: i32) -> (i32, i32) {
    %c0_i32 = arith.constant 0 : i32
    %c0_i32_0 = arith.constant 0 : i32
    %c0_i32_1 = arith.constant 0 : i32
    return %c0_i32, %c0_i32_0 : i32, i32
  }
  func.func @transform_4(%arg0: i32) -> (i32, i32) {
    %c0_i32 = arith.constant 0 : i32
    %c0_i32_0 = arith.constant 0 : i32
    return %arg0, %c0_i32 : i32, i32
  }
  func.func @transform_5(%arg0: i32) -> (i32, i32) {
    %c0_i32 = arith.constant 0 : i32
    %c0_i32_0 = arith.constant 0 : i32
    return %arg0, %c0_i32 : i32, i32
  }
}

</mosaic_0001>

<llo_original>
// kernel: tpu_custom_call.1
$region0: #{tpu_custom_call.1}
  #allocation0 [shape = 'u32[]', space=smem, size = 0x4, offset = 0x4, fixed_abs, tag = 'smem constant byte address 0x4 - core index']
  #allocation1 [shape = 'u32[144,128]{1,0:T(1,128)}', space=vmem, size = 0x12000, scoped, tag = 'internal scratch']
  %s0 = inlined_call_operand.vmem [shape: f32[27], index: 0, kind: input, shape index: {}]
  %s1 = inlined_call_operand.hbm [shape: f32[2], index: 1, kind: input, shape index: {}]
  %s2 = inlined_call_operand.hbm [shape: f32[9,256], index: 2, kind: input, shape index: {}]
  %s3 = inlined_call_operand.vmem [shape: f32[8,2], index: 3, kind: input, shape index: {}]
  %s4 = inlined_call_operand.vmem [shape: f32[8,256], index: 4, kind: input, shape index: {}]
  %s5 = inlined_call_operand.hbm [shape: f32[8,256], index: 5, kind: output, shape index: {}]
  %s6 = sld [smem:[#allocation0]]
  $region42: #{tpu_custom_call.1} parent=0
    _
  %s8 = ssub.s32 1, %s6
  %s9 = scalar_select 0, %s8, %s6
  $region1: #{tpu_custom_call.1} parent=0
    #allocation2 [shape = 'u8[512]{0}', space=smem, size = 0x200, scoped, tag = 'input window, operand 0, single buffered']
    #allocation3 [shape = 's32[1]{0}', space=sflag, size = 0x4, scoped, tag = 'scoped memory for tpu_custom_call.1']
    #allocation4 [shape = 's32[1]{0}', space=sflag, size = 0x4, scoped, tag = 'scoped memory for tpu_custom_call.1']
    #allocation5 [shape = 's32[1]{0}', space=sflag, size = 0x4, scoped, tag = 'scoped memory for tpu_custom_call.1']
    #allocation6 [shape = 's32[1]{0}', space=sflag, size = 0x4, scoped, tag = 'scoped memory for tpu_custom_call.1']
    #allocation7 [shape = 'u8[512]{0}', space=smem, size = 0x200, scoped, tag = 'input window, operand 1, single buffered']
    #allocation8 [shape = 'u8[16384]{0}', space=vmem, size = 0x4000, scoped, tag = 'input window, operand 2, single buffered']
    #allocation9 [shape = 'u8[8192]{0}', space=vmem, size = 0x2000, scoped, tag = 'output window, operand 0, single buffered']
    %10 = vsyncpa [#allocation6], 0
    %11 = vsyncpa [#allocation5], 0
    %12 = vsyncpa [#allocation3], 0
    %13 = vsyncpa [#allocation4], 0
    // Predicated region
    $region2: #{tpu_custom_call.1} parent=1 // pred_check
      _
    $region3: #{tpu_custom_call.1} parent=1 // pred_check_branch
      %15 = sbr.rel (0) target = $region5
    $region4: #{tpu_custom_call.1} parent=1 // pred_region
      %s17 = ssub.s32 16, 16
      %18 = vsyncadd [#allocation6], %s17
      %s20 = sshll.u32 %s0, 4
      %s21 = int_to_ptr.vmem [resolvable:$true] %s20
      %23 = dma.vmem_to_smem %s21, 16, [#allocation2], [#allocation6]
    $region5: #{tpu_custom_call.1} parent=1 // pred_fallthru
      _
    // Predicated region
    $region6: #{tpu_custom_call.1} parent=1 // pred_check
      _
    $region7: #{tpu_custom_call.1} parent=1 // pred_check_branch
      %25 = sbr.rel (0) target = $region9
    $region8: #{tpu_custom_call.1} parent=1 // pred_region
      %s27 = ssub.s32 16, 16
      %28 = vsyncadd [#allocation5], %s27
      %31 = dma.hbm_to_smem %s1, 16, [#allocation7], [#allocation5]
    $region9: #{tpu_custom_call.1} parent=1 // pred_fallthru
      _
    // Predicated region
    $region10: #{tpu_custom_call.1} parent=1 // pred_check
      _
    $region11: #{tpu_custom_call.1} parent=1 // pred_check_branch
      %33 = sbr.rel (0) target = $region13
    $region12: #{tpu_custom_call.1} parent=1 // pred_region
      %s35 = ssub.s32 512, 512
      %36 = vsyncadd [#allocation3], %s35
      %s37 = sshll.u32 [#allocation8], 4
      %s38 = int_to_ptr.vmem [resolvable:$true] %s37
      %43 = dma.hbm_to_vmem [thread:$0]  %s2, 512, %s38, [#allocation3], 256, 256, 16
    $region13: #{tpu_custom_call.1} parent=1 // pred_fallthru
      _
    // Predicated region
    $region14: #{tpu_custom_call.1} parent=1 // pred_check
      _
    $region15: #{tpu_custom_call.1} parent=1 // pred_check_branch
      %45 = sbr.rel (0) target = $region17
    $region16: #{tpu_custom_call.1} parent=1 // pred_region
      _
    $region17: #{tpu_custom_call.1} parent=1 // pred_fallthru
      _
    // Predicated region
    $region18: #{tpu_custom_call.1} parent=1 // pred_check
      _
    $region19: #{tpu_custom_call.1} parent=1 // pred_check_branch
      %47 = sbr.rel (0) target = $region21
    $region20: #{tpu_custom_call.1} parent=1 // pred_region
      _
    $region21: #{tpu_custom_call.1} parent=1 // pred_fallthru
      _
    // Predicated region
    $region22: #{tpu_custom_call.1} parent=1 // pred_check
      _
    $region23: #{tpu_custom_call.1} parent=1 // pred_check_branch
      %49 = sbr.rel (0) target = $region25
    $region24: #{tpu_custom_call.1} parent=1 // pred_region
      %50 = dma.done [#allocation6], 16
    $region25: #{tpu_custom_call.1} parent=1 // pred_fallthru
      _
    // Predicated region
    $region26: #{tpu_custom_call.1} parent=1 // pred_check
      _
    $region27: #{tpu_custom_call.1} parent=1 // pred_check_branch
      %52 = sbr.rel (0) target = $region29
    $region28: #{tpu_custom_call.1} parent=1 // pred_region
      %53 = dma.done [#allocation5], 16
    $region29: #{tpu_custom_call.1} parent=1 // pred_fallthru
      _
    // Predicated region
    $region30: #{tpu_custom_call.1} parent=1 // pred_check
      _
    $region31: #{tpu_custom_call.1} parent=1 // pred_check_branch
      %55 = sbr.rel (0) target = $region33
    $region32: #{tpu_custom_call.1} parent=1 // pred_region
      %56 = dma.done [#allocation3], 512
    $region33: #{tpu_custom_call.1} parent=1 // pred_fallthru
      _
    %57 = sfence
    %v58 = vld [vmem:[%s4] sm:$0xff]
    %v59 = vld [vmem:[%s4 + $0x8] sm:$0xff]
    %v60 = vld [vmem:[%s3] sm:$0xff]
    %v61 = vrot.slane %v58, 7
    %v62 = vrot.slane %v59, 7
    %64 = vset.pattern.permute.xlu0 0
    %65 = vperm.xlu0 %64, %v60
    %v66 = vpop.permute.xlu0 %65
    %v68 = vmul.f32 %v61, %v66
    %v69 = vmul.f32 %v62, %v66
    %v70 = vrot.slane %v58, 1
    %v71 = vrot.slane %v59, 1
    %72 = vset.pattern.permute.xlu0 1
    %73 = vperm.xlu0 %72, %v60
    %v74 = vpop.permute.xlu0 %73
    %v76 = vmul.f32 %v70, %v74
    %v77 = vmul.f32 %v71, %v74
    %s78 = sld [smem:[#allocation2]]
    %v79 = vstv %s78
    %v80 = vmul.f32 %v79, %v68
    %v81 = vmul.f32 %v79, %v69
    %s82 = sld [smem:[#allocation2 + $0x9]]
    %v83 = vstv %s82
    %v84 = vmul.f32 %v83, %v58
    %v85 = vmul.f32 %v83, %v59
    %v86 = vadd.f32 %v80, %v84
    %v87 = vadd.f32 %v81, %v85
    %s88 = sld [smem:[#allocation2 + $0x12]]
    %v89 = vstv %s88
    %v90 = vmul.f32 %v89, %v76
    %v91 = vmul.f32 %v89, %v77
    %v92 = vadd.f32 %v86, %v90
    %v93 = vadd.f32 %v87, %v91
    %94 = vrot.lane.b32.xlu0 %v92, 17
    %v95 = vpop.permute.xlu0 %94
    %96 = vrot.lane.b32.xlu0 %v93, 17
    %v97 = vpop.permute.xlu0 %96
    %v98 = vlaneseq
    %v99 = vand.u32 %v98, 127
    %vm100 = vcmp.lt.s32.totalorder %v99, 17
    %v101 = vsel %vm100, %v95, %v97
    %v102 = vsel %vm100, %v97, %v95
    %v103 = vld [vmem:[#allocation8] ss:$8 sm:$0x3]
    %v105 = vlaneseq
    %v106 = vshrl.u32 %v105, 7
    %v107 = vsub.s32 0, %v106
    %v108 = vrot.slane %v103, %v107
    %v109 = vlaneseq
    %v110 = vshrl.u32 %v109, 7
    %v111 = vsub.s32 1, %v110
    %v112 = vrot.slane %v103, %v111
    %v115 = vmul.f32 %v102, %v108
    %v116 = vmul.f32 %v101, %v112
    %s117 = sld [smem:[#allocation2 + $0x1]]
    %v118 = vstv %s117
    %v119 = vmul.f32 %v118, %v68
    %v120 = vmul.f32 %v118, %v69
    %s121 = sld [smem:[#allocation2 + $0xa]]
    %v122 = vstv %s121
    %v123 = vmul.f32 %v122, %v58
    %v124 = vmul.f32 %v122, %v59
    %v125 = vadd.f32 %v119, %v123
    %v126 = vadd.f32 %v120, %v124
    %s127 = sld [smem:[#allocation2 + $0x13]]
    %v128 = vstv %s127
    %v129 = vmul.f32 %v128, %v76
    %v130 = vmul.f32 %v128, %v77
    %v131 = vadd.f32 %v125, %v129
    %v132 = vadd.f32 %v126, %v130
    %133 = vrot.lane.b32.xlu0 %v131, 16
    %v134 = vpop.permute.xlu0 %133
    %135 = vrot.lane.b32.xlu0 %v132, 16
    %v136 = vpop.permute.xlu0 %135
    %vm137 = vcmp.lt.s32.totalorder %v99, 16
    %v138 = vsel %vm137, %v134, %v136
    %v139 = vsel %vm137, %v136, %v134
    %s140 = scalar_lea.vmem [#allocation8], 1
    %v141 = vld [vmem:[%s140] ss:$8 sm:$0x3]
    %v143 = vlaneseq
    %v144 = vshrl.u32 %v143, 7
    %v145 = vsub.s32 0, %v144
    %v146 = vrot.slane %v141, %v145
    %v147 = vlaneseq
    %v148 = vshrl.u32 %v147, 7
    %v149 = vsub.s32 1, %v148
    %v150 = vrot.slane %v141, %v149
    %v153 = vmul.f32 %v139, %v146
    %v154 = vmul.f32 %v138, %v150
    %v155 = vadd.f32 %v115, %v153
    %v156 = vadd.f32 %v116, %v154
    %s157 = sld [smem:[#allocation2 + $0x2]]
    %v158 = vstv %s157
    %v159 = vmul.f32 %v158, %v68
    %v160 = vmul.f32 %v158, %v69
    %s161 = sld [smem:[#allocation2 + $0xb]]
    %v162 = vstv %s161
    %v163 = vmul.f32 %v162, %v58
    %v164 = vmul.f32 %v162, %v59
    %v165 = vadd.f32 %v159, %v163
    %v166 = vadd.f32 %v160, %v164
    %s167 = sld [smem:[#allocation2 + $0x14]]
    %v168 = vstv %s167
    %v169 = vmul.f32 %v168, %v76
    %v170 = vmul.f32 %v168, %v77
    %v171 = vadd.f32 %v165, %v169
    %v172 = vadd.f32 %v166, %v170
    %173 = vrot.lane.b32.xlu0 %v171, 15
    %v174 = vpop.permute.xlu0 %173
    %175 = vrot.lane.b32.xlu0 %v172, 15
    %v176 = vpop.permute.xlu0 %175
    %vm177 = vcmp.lt.s32.totalorder %v99, 15
    %v178 = vsel %vm177, %v174, %v176
    %v179 = vsel %vm177, %v176, %v174
    %s180 = scalar_lea.vmem [#allocation8], 2
    %v181 = vld [vmem:[%s180] ss:$8 sm:$0x3]
    %v183 = vlaneseq
    %v184 = vshrl.u32 %v183, 7
    %v185 = vsub.s32 0, %v184
    %v186 = vrot.slane %v181, %v185
    %v187 = vlaneseq
    %v188 = vshrl.u32 %v187, 7
    %v189 = vsub.s32 1, %v188
    %v190 = vrot.slane %v181, %v189
    %v193 = vmul.f32 %v179, %v186
    %v194 = vmul.f32 %v178, %v190
    %v195 = vadd.f32 %v155, %v193
    %v196 = vadd.f32 %v156, %v194
    %s197 = sld [smem:[#allocation2 + $0x3]]
    %v198 = vstv %s197
    %v199 = vmul.f32 %v198, %v68
    %v200 = vmul.f32 %v198, %v69
    %s201 = sld [smem:[#allocation2 + $0xc]]
    %v202 = vstv %s201
    %v203 = vmul.f32 %v202, %v58
    %v204 = vmul.f32 %v202, %v59
    %v205 = vadd.f32 %v199, %v203
    %v206 = vadd.f32 %v200, %v204
    %s207 = sld [smem:[#allocation2 + $0x15]]
    %v208 = vstv %s207
    %v209 = vmul.f32 %v208, %v76
    %v210 = vmul.f32 %v208, %v77
    %v211 = vadd.f32 %v205, %v209
    %v212 = vadd.f32 %v206, %v210
    %213 = vrot.lane.b32.xlu0 %v211, 1
    %v214 = vpop.permute.xlu0 %213
    %215 = vrot.lane.b32.xlu0 %v212, 1
    %v216 = vpop.permute.xlu0 %215
    %vm217 = vcmp.lt.s32.totalorder %v99, 1
    %v218 = vsel %vm217, %v214, %v216
    %v219 = vsel %vm217, %v216, %v214
    %s220 = scalar_lea.vmem [#allocation8], 3
    %v221 = vld [vmem:[%s220] ss:$8 sm:$0x3]
    %v223 = vlaneseq
    %v224 = vshrl.u32 %v223, 7
    %v225 = vsub.s32 0, %v224
    %v226 = vrot.slane %v221, %v225
    %v227 = vlaneseq
    %v228 = vshrl.u32 %v227, 7
    %v229 = vsub.s32 1, %v228
    %v230 = vrot.slane %v221, %v229
    %v233 = vmul.f32 %v219, %v226
    %v234 = vmul.f32 %v218, %v230
    %v235 = vadd.f32 %v195, %v233
    %v236 = vadd.f32 %v196, %v234
    %s237 = sld [smem:[#allocation2 + $0x4]]
    %v238 = vstv %s237
    %v239 = vmul.f32 %v238, %v68
    %v240 = vmul.f32 %v238, %v69
    %s241 = sld [smem:[#allocation2 + $0xd]]
    %v242 = vstv %s241
    %v243 = vmul.f32 %v242, %v58
    %v244 = vmul.f32 %v242, %v59
    %v245 = vadd.f32 %v239, %v243
    %v246 = vadd.f32 %v240, %v244
    %s247 = sld [smem:[#allocation2 + $0x16]]
    %v248 = vstv %s247
    %v249 = vmul.f32 %v248, %v76
    %v250 = vmul.f32 %v248, %v77
    %v251 = vadd.f32 %v245, %v249
    %v252 = vadd.f32 %v246, %v250
    %v253 = vadd.f32 %v235, %v251
    %v254 = vadd.f32 %v236, %v252
    %s255 = sld [smem:[#allocation2 + $0x5]]
    %v256 = vstv %s255
    %v257 = vmul.f32 %v256, %v68
    %v258 = vmul.f32 %v256, %v69
    %s259 = sld [smem:[#allocation2 + $0xe]]
    %v260 = vstv %s259
    %v261 = vmul.f32 %v260, %v58
    %v262 = vmul.f32 %v260, %v59
    %v263 = vadd.f32 %v257, %v261
    %v264 = vadd.f32 %v258, %v262
    %s265 = sld [smem:[#allocation2 + $0x17]]
    %v266 = vstv %s265
    %v267 = vmul.f32 %v266, %v76
    %v268 = vmul.f32 %v266, %v77
    %v269 = vadd.f32 %v263, %v267
    %v270 = vadd.f32 %v264, %v268
    %271 = vrot.lane.b32.xlu0 %v269, 127
    %v272 = vpop.permute.xlu0 %271
    %273 = vrot.lane.b32.xlu0 %v270, 127
    %v274 = vpop.permute.xlu0 %273
    %vm275 = vcmp.lt.s32.totalorder %v99, 127
    %v276 = vsel %vm275, %v272, %v274
    %v277 = vsel %vm275, %v274, %v272
    %s278 = scalar_lea.vmem [#allocation8], 5
    %v279 = vld [vmem:[%s278] ss:$8 sm:$0x3]
    %v281 = vlaneseq
    %v282 = vshrl.u32 %v281, 7
    %v283 = vsub.s32 0, %v282
    %v284 = vrot.slane %v279, %v283
    %v285 = vlaneseq
    %v286 = vshrl.u32 %v285, 7
    %v287 = vsub.s32 1, %v286
    %v288 = vrot.slane %v279, %v287
    %v291 = vmul.f32 %v276, %v284
    %v292 = vmul.f32 %v277, %v288
    %v293 = vadd.f32 %v253, %v291
    %v294 = vadd.f32 %v254, %v292
    %s295 = sld [smem:[#allocation2 + $0x6]]
    %v296 = vstv %s295
    %v297 = vmul.f32 %v296, %v68
    %v298 = vmul.f32 %v296, %v69
    %s299 = sld [smem:[#allocation2 + $0xf]]
    %v300 = vstv %s299
    %v301 = vmul.f32 %v300, %v58
    %v302 = vmul.f32 %v300, %v59
    %v303 = vadd.f32 %v297, %v301
    %v304 = vadd.f32 %v298, %v302
    %s305 = sld [smem:[#allocation2 + $0x18]]
    %v306 = vstv %s305
    %v307 = vmul.f32 %v306, %v76
    %v308 = vmul.f32 %v306, %v77
    %v309 = vadd.f32 %v303, %v307
    %v310 = vadd.f32 %v304, %v308
    %311 = vrot.lane.b32.xlu0 %v309, 113
    %v312 = vpop.permute.xlu0 %311
    %313 = vrot.lane.b32.xlu0 %v310, 113
    %v314 = vpop.permute.xlu0 %313
    %vm315 = vcmp.lt.s32.totalorder %v99, 113
    %v316 = vsel %vm315, %v312, %v314
    %v317 = vsel %vm315, %v314, %v312
    %s318 = scalar_lea.vmem [#allocation8], 6
    %v319 = vld [vmem:[%s318] ss:$8 sm:$0x3]
    %v321 = vlaneseq
    %v322 = vshrl.u32 %v321, 7
    %v323 = vsub.s32 0, %v322
    %v324 = vrot.slane %v319, %v323
    %v325 = vlaneseq
    %v326 = vshrl.u32 %v325, 7
    %v327 = vsub.s32 1, %v326
    %v328 = vrot.slane %v319, %v327
    %v331 = vmul.f32 %v316, %v324
    %v332 = vmul.f32 %v317, %v328
    %v333 = vadd.f32 %v293, %v331
    %v334 = vadd.f32 %v294, %v332
    %s335 = sld [smem:[#allocation2 + $0x7]]
    %v336 = vstv %s335
    %v337 = vmul.f32 %v336, %v68
    %v338 = vmul.f32 %v336, %v69
    %s339 = sld [smem:[#allocation2 + $0x10]]
    %v340 = vstv %s339
    %v341 = vmul.f32 %v340, %v58
    %v342 = vmul.f32 %v340, %v59
    %v343 = vadd.f32 %v337, %v341
    %v344 = vadd.f32 %v338, %v342
    %s345 = sld [smem:[#allocation2 + $0x19]]
    %v346 = vstv %s345
    %v347 = vmul.f32 %v346, %v76
    %v348 = vmul.f32 %v346, %v77
    %v349 = vadd.f32 %v343, %v347
    %v350 = vadd.f32 %v344, %v348
    %351 = vrot.lane.b32.xlu0 %v349, 112
    %v352 = vpop.permute.xlu0 %351
    %353 = vrot.lane.b32.xlu0 %v350, 112
    %v354 = vpop.permute.xlu0 %353
    %vm355 = vcmp.lt.s32.totalorder %v99, 112
    %v356 = vsel %vm355, %v352, %v354
    %v357 = vsel %vm355, %v354, %v352
    %s358 = scalar_lea.vmem [#allocation8], 7
    %v359 = vld [vmem:[%s358] ss:$8 sm:$0x3]
    %v361 = vlaneseq
    %v362 = vshrl.u32 %v361, 7
    %v363 = vsub.s32 0, %v362
    %v364 = vrot.slane %v359, %v363
    %v365 = vlaneseq
    %v366 = vshrl.u32 %v365, 7
    %v367 = vsub.s32 1, %v366
    %v368 = vrot.slane %v359, %v367
    %v371 = vmul.f32 %v356, %v364
    %v372 = vmul.f32 %v357, %v368
    %v373 = vadd.f32 %v333, %v371
    %v374 = vadd.f32 %v334, %v372
    %s375 = sld [smem:[#allocation2 + $0x8]]
    %v376 = vstv %s375
    %v377 = vmul.f32 %v376, %v68
    %v378 = vmul.f32 %v376, %v69
    %s379 = sld [smem:[#allocation2 + $0x11]]
    %v380 = vstv %s379
    %v381 = vmul.f32 %v380, %v58
    %v382 = vmul.f32 %v380, %v59
    %v383 = vadd.f32 %v377, %v381
    %v384 = vadd.f32 %v378, %v382
    %s385 = sld [smem:[#allocation2 + $0x1a]]
    %v386 = vstv %s385
    %v387 = vmul.f32 %v386, %v76
    %v388 = vmul.f32 %v386, %v77
    %v389 = vadd.f32 %v383, %v387
    %v390 = vadd.f32 %v384, %v388
    %391 = vrot.lane.b32.xlu0 %v389, 111
    %v392 = vpop.permute.xlu0 %391
    %393 = vrot.lane.b32.xlu0 %v390, 111
    %v394 = vpop.permute.xlu0 %393
    %vm395 = vcmp.lt.s32.totalorder %v99, 111
    %v396 = vsel %vm395, %v392, %v394
    %v397 = vsel %vm395, %v394, %v392
    %s398 = scalar_lea.vmem [#allocation8], 16
    %v399 = vld [vmem:[%s398] ss:$8 sm:$0x3]
    %v401 = vlaneseq
    %v402 = vshrl.u32 %v401, 7
    %v403 = vsub.s32 0, %v402
    %v404 = vrot.slane %v399, %v403
    %v405 = vlaneseq
    %v406 = vshrl.u32 %v405, 7
    %v407 = vsub.s32 1, %v406
    %v408 = vrot.slane %v399, %v407
    %v411 = vmul.f32 %v396, %v404
    %v412 = vmul.f32 %v397, %v408
    %v413 = vadd.f32 %v373, %v411
    %v414 = vadd.f32 %v374, %v412
    %s415 = sld [smem:[#allocation7]]
    %s416 = sld [smem:[#allocation7 + $0x1]]
    %v417 = vstv %s415
    %v418 = vadd.f32 %v413, %v417
    %v419 = vadd.f32 %v414, %v417
    %v420 = vmul.f32 %v418, 0.5
    %v421 = vmul.f32 %v419, 0.5
    %v422 = vtanh.pop %v420
    %v423 = vtanh.pop %v421
    %s424 = smul.f32 %s416, 0.5
    %v425 = vstv %s424
    %v426 = vmul.f32 %v425, %v422
    %v427 = vmul.f32 %v425, %v423
    %v428 = vadd.f32 %v426, %v425
    %v429 = vadd.f32 %v427, %v425
    %v430 = vadd.f32 %v428, 1.0
    %v431 = vadd.f32 %v429, 1.0
    %v432 = vmul.f32 %v58, %v430
    %v433 = vmul.f32 %v59, %v431
    %434 = vst [vmem:[#allocation9] sm:$0xff] %v432
    %435 = vst [vmem:[#allocation9 + $0x8] sm:$0xff] %v433
    // Predicated region
    $region34: #{tpu_custom_call.1} parent=1 // pred_check
      _
    $region35: #{tpu_custom_call.1} parent=1 // pred_check_branch
      %437 = sbr.rel (0) target = $region37
    $region36: #{tpu_custom_call.1} parent=1 // pred_region
      %s439 = ssub.s32 256, 256
      %440 = vsyncadd [#allocation4], %s439
      %s442 = sshll.u32 [#allocation9], 4
      %s443 = int_to_ptr.vmem [resolvable:$true] %s442
      %445 = dma.vmem_to_hbm [thread:$0]  %s443, 256, %s5, [#allocation4]
    $region37: #{tpu_custom_call.1} parent=1 // pred_fallthru
      _
    // Predicated region
    $region38: #{tpu_custom_call.1} parent=1 // pred_check
      _
    $region39: #{tpu_custom_call.1} parent=1 // pred_check_branch
      %447 = sbr.rel (0) target = $region41
    $region40: #{tpu_custom_call.1} parent=1 // pred_region
      %448 = dma.done [#allocation4], 256
    $region41: #{tpu_custom_call.1} parent=1 // pred_fallthru
      _
    %449 = vsyncpa [#allocation3], 1
    %450 = vsyncpa [#allocation4], 1
    %451 = vsyncpa [#allocation5], 1
    %452 = vsyncpa [#allocation6], 1

</llo_original>
